<compile_context>
chip_gen: v6e
topology: v6e:2x2x1
jax: 0.10.0
libtpu: 0.0.40
codegen_flags: <defaults>
</compile_context>

<pallas_src>
import jax
import jax.numpy as jnp
from jax.experimental import pallas as pl
from jax.experimental.pallas import tpu as pltpu


def _round_up(n: int, m: int) -> int:
    return ((n + m - 1) // m) * m


def _largest_aligned_divisor(total: int, cap: int, align: int = 128) -> int:
    """Largest multiple of `align` <= cap that divides `total` (total % align == 0)."""
    best = align
    t = align
    while t <= cap:
        if total % t == 0:
            best = t
        t += align
    return best


def mlp_kernel(x_ref, w1_ref, b1_ref, w2_ref, b2_ref, o_ref, h_ref):
    """Fused fc1 -> bias -> ReLU -> out -> bias for one (batch tile, out tile).

    Grid = (batch tiles i, output-feature tiles j), j innermost.  The fc1 matmul
    + bias + ReLU for a batch tile is computed once (j == 0) into the f32 VMEM
    scratch h_ref and reused for every output-feature tile of that batch tile.
    Weights arrive pre-transposed to (K, N) layout, so both matmuls are the
    canonical (M,K)x(K,N) contraction (no in-kernel transpose).
    """
    @pl.when(pl.program_id(1) == 0)
    def _():
        h = jnp.dot(x_ref[...].astype(w1_ref.dtype), w1_ref[...],
                    preferred_element_type=jnp.float32)
        h_ref[...] = jnp.maximum(h + b1_ref[...], 0.0)  # bias + ReLU in f32 on the VPU

    # Intentional downcast of the ReLU activations to the MXU dtype (bf16 by
    # default); accumulation stays f32 via preferred_element_type.
    o = jnp.dot(h_ref[...].astype(w2_ref.dtype), w2_ref[...],
                preferred_element_type=jnp.float32)
    o_ref[...] = (o + b2_ref[...]).astype(o_ref.dtype)


def prepare_params(w1, b1, w2, b2, *, mxu_dtype=jnp.bfloat16):
    """One-time parameter preparation (call at init time, not per forward).

    - Zero-pads every feature dim up to a multiple of 128 (lane-dense tiles,
      full MXU passes, unmasked vst).
    - Transposes the PyTorch (out_features, in_features) weights ONCE to (K, N)
      layout so the kernel uses canonical contraction with no per-step relayout.
    - Casts weights to the MXU dtype (bf16 default: ~4x MXU throughput and half
      the resident-weight VMEM vs f32).  Biases stay f32.
    """
    hidden_size, input_size = w1.shape
    output_size = w2.shape[0]
    in_pad = _round_up(input_size, 128)
    hid_pad = _round_up(hidden_size, 128)
    out_pad = _round_up(output_size, 128)
    wdt = jnp.float32 if mxu_dtype is None else mxu_dtype

    w1_kn = jnp.pad(w1, ((0, hid_pad - hidden_size), (0, in_pad - input_size))).T.astype(wdt)
    w2_kn = jnp.pad(w2, ((0, out_pad - output_size), (0, hid_pad - hidden_size))).T.astype(wdt)
    b1_p = jnp.pad(b1.astype(jnp.float32), (0, hid_pad - hidden_size)).reshape(1, hid_pad)
    b2_p = jnp.pad(b2.astype(jnp.float32), (0, out_pad - output_size)).reshape(1, out_pad)
    return dict(w1=w1_kn, b1=b1_p, w2=w2_kn, b2=b2_p,
                input_size=input_size, hidden_size=hidden_size,
                output_size=output_size)


def nn_forward(x, params, *, tile_b_max=512, tile_n_max=512):
    """Forward pass of NN.  x: (B, input_size) -> (B, output_size) in x.dtype."""
    B, input_size = x.shape
    assert input_size == params["input_size"]
    w1, b1, w2, b2 = params["w1"], params["b1"], params["w2"], params["b2"]
    in_pad, hid_pad = w1.shape
    out_pad = w2.shape[1]
    output_size = params["output_size"]

    # ---- tiling ----
    # Batch: 128-aligned, divides the padded batch exactly (no over-padding
    # beyond 128-alignment), split into >=2 tiles when possible so the
    # "parallel" axis actually shards across v7x's two TensorCores.
    b_al = _round_up(B, 128)
    tile_b = _largest_aligned_divisor(b_al, min(tile_b_max, b_al))
    if tile_b == b_al and b_al >= 256:
        tile_b = _largest_aligned_divisor(b_al, b_al // 2)
    # Output features: bounds the streamed W2 block so the kernel scales on v7x.
    tile_n = _largest_aligned_divisor(out_pad, min(tile_n_max, out_pad))
    grid = (b_al // tile_b, out_pad // tile_n)

    if (b_al, in_pad) != (B, input_size):
        x_p = jnp.pad(x, ((0, b_al - B), (0, in_pad - input_size)))
    else:
        x_p = x

    # ---- explicit VMEM accounting (conservative: 2 buffers everywhere) ----
    xsz = jnp.dtype(x.dtype).itemsize
    wsz = jnp.dtype(w1.dtype).itemsize
    vmem_needed = (2 * tile_b * in_pad * xsz          # x tiles
                   + 2 * in_pad * hid_pad * wsz       # W1 (resident)
                   + 2 * hid_pad * 4                  # b1
                   + 2 * hid_pad * tile_n * wsz       # W2 tiles (streamed)
                   + 2 * tile_n * 4                   # b2 tiles
                   + 2 * tile_b * tile_n * xsz        # out tiles
                   + tile_b * hid_pad * 4)            # h scratch (f32)
    # Cap at 64 MiB so the request is valid on v7x as well as v5e/v6e.
    vmem_limit = min(max(int(vmem_needed * 1.5) + (2 << 20), 32 << 20), 64 << 20)

    flops = 2 * b_al * (in_pad * hid_pad + hid_pad * out_pad)
    bytes_accessed = (x_p.size * xsz + w1.size * wsz + w2.size * wsz
                      + b1.size * 4 + b2.size * 4 + b_al * out_pad * xsz)

    def call(single_buffer_weights):
        def resident(shape):
            # Grid-invariant operands: a single VMEM buffer is enough (the block
            # never changes), halving their footprint vs the default 2 buffers.
            if single_buffer_weights:
                return pl.BlockSpec(shape, lambda i, j: (0, 0),
                                    pipeline_mode=pl.Buffered(1))
            return pl.BlockSpec(shape, lambda i, j: (0, 0))

        return pl.pallas_call(
            mlp_kernel,
            out_shape=jax.ShapeDtypeStruct((b_al, out_pad), x.dtype),
            grid=grid,
            in_specs=[
                pl.BlockSpec((tile_b, in_pad), lambda i, j: (i, 0)),   # x (streamed over i)
                resident((in_pad, hid_pad)),                           # W1 (grid-invariant)
                resident((1, hid_pad)),                                # b1 (grid-invariant)
                pl.BlockSpec((hid_pad, tile_n), lambda i, j: (0, j)),  # W2 tile (streamed over j)
                pl.BlockSpec((1, tile_n), lambda i, j: (0, j)),        # b2 tile
            ],
            out_specs=pl.BlockSpec((tile_b, tile_n), lambda i, j: (i, j)),
            scratch_shapes=[pltpu.VMEM((tile_b, hid_pad), jnp.float32)],
            compiler_params=pltpu.CompilerParams(
                dimension_semantics=("parallel", "arbitrary"),
                vmem_limit_bytes=vmem_limit),
            cost_estimate=pl.CostEstimate(
                flops=flops, bytes_accessed=bytes_accessed, transcendentals=0),
        )(x_p, w1, b1, w2, b2)

    try:
        out_padded = call(True)
    except Exception:
        # pipeline_mode=pl.Buffered(1) not supported on this jax build; fall back
        # to default double-buffering (costs VMEM, not correctness).
        out_padded = call(False)

    # Strip batch + lane padding.
    return out_padded[:B, :output_size]


if __name__ == "__main__":
    # Small shapes consistent with the module's forward.
    batch = 8
    input_size = 32
    hidden_size = 64
    output_size = 16

    key = jax.random.PRNGKey(0)
    kx, k1, k2, k3, k4 = jax.random.split(key, 5)

    # Deterministic parameter init (PyTorch-style uniform(-1/sqrt(fan_in), +)).
    lim1 = 1.0 / (input_size ** 0.5)
    lim2 = 1.0 / (hidden_size ** 0.5)
    x = jax.random.normal(kx, (batch, input_size), dtype=jnp.float32)
    w1 = jax.random.uniform(k1, (hidden_size, input_size), jnp.float32, -lim1, lim1)
    b1 = jax.random.uniform(k2, (hidden_size,), jnp.float32, -lim1, lim1)
    w2 = jax.random.uniform(k3, (output_size, hidden_size), jnp.float32, -lim2, lim2)
    b2 = jax.random.uniform(k4, (output_size,), jnp.float32, -lim2, lim2)

    # Reference (same math as the PyTorch forward).
    ref = jnp.maximum(x @ w1.T + b1, 0.0) @ w2.T + b2

    # f32 MXU path: tight correctness check.
    params_f32 = prepare_params(w1, b1, w2, b2, mxu_dtype=None)
    out_f32 = jax.block_until_ready(nn_forward(x, params_f32))
    assert out_f32.shape == (batch, output_size)
    assert jnp.allclose(out_f32, ref, atol=1e-5, rtol=1e-5)

    # Default bf16 MXU path (production path on v6e/v7x): looser, bf16-level check.
    params_bf16 = prepare_params(w1, b1, w2, b2)  # mxu_dtype=jnp.bfloat16
    out_bf16 = jax.block_until_ready(nn_forward(x, params_bf16))
    assert out_bf16.shape == (batch, output_size)
    assert jnp.allclose(out_bf16, ref, atol=5e-2, rtol=5e-2)

    print("KERNEL_OK")
</pallas_src>

<mosaic_0001>
module attributes {stable_mosaic.version = 11 : i64} {
  func.func @mlp_kernel(%arg0: i32, %arg1: i32, %arg2: memref<128x128xf32, #tpu.memory_space<vmem>>, %arg3: memref<128x128xf32, #tpu.memory_space<vmem>>, %arg4: memref<1x128xf32, #tpu.memory_space<vmem>>, %arg5: memref<128x128xf32, #tpu.memory_space<vmem>>, %arg6: memref<1x128xf32, #tpu.memory_space<vmem>>, %arg7: memref<128x128xf32, #tpu.memory_space<vmem>>, %arg8: memref<128x128xf32, #tpu.memory_space<vmem>>) attributes {dimension_semantics = [#tpu.dimension_semantics<parallel>, #tpu.dimension_semantics<arbitrary>], iteration_bounds = array<i64: 1, 1>, scalar_prefetch = 0 : i64, scratch_operands = 1 : i64, tpu.core_type = #tpu.core_type<tc>, window_params = [{transform_indices = @transform_0, window_bounds = array<i64: 128, 128>}, {pipeline_mode = #tpu.pipeline_mode<synchronous>, transform_indices = @transform_1, window_bounds = array<i64: 128, 128>}, {pipeline_mode = #tpu.pipeline_mode<synchronous>, transform_indices = @transform_2, window_bounds = array<i64: 1, 128>}, {transform_indices = @transform_3, window_bounds = array<i64: 128, 128>}, {transform_indices = @transform_4, window_bounds = array<i64: 1, 128>}, {transform_indices = @transform_5, window_bounds = array<i64: 128, 128>}]} {
    %c0_i32 = arith.constant 0 : i32
    %0 = arith.cmpi eq, %arg1, %c0_i32 : i32
    %1 = arith.extui %0 : i1 to i32
    %c0_i32_0 = arith.constant 0 : i32
    %2 = arith.cmpi ne, %1, %c0_i32_0 : i32
    scf.if %2 {
      %c0_8 = arith.constant 0 : index
      %c0_9 = arith.constant 0 : index
      %10 = vector.load %arg2[%c0_8, %c0_9] : memref<128x128xf32, #tpu.memory_space<vmem>>, vector<128x128xf32>
      %c0_10 = arith.constant 0 : index
      %c0_11 = arith.constant 0 : index
      %11 = vector.load %arg3[%c0_10, %c0_11] : memref<128x128xf32, #tpu.memory_space<vmem>>, vector<128x128xf32>
      %cst_12 = arith.constant dense<0.000000e+00> : vector<128x128xf32>
      %12 = tpu.matmul %10, %11, %cst_12 {dimension_numbers = #tpu.dot_dimension_numbers<[1], [0], [0], [1], [0, 0, 1, 1], [], []>} : vector<128x128xf32>, vector<128x128xf32>, vector<128x128xf32> -> vector<128x128xf32>
      %c0_13 = arith.constant 0 : index
      %c0_14 = arith.constant 0 : index
      %13 = vector.load %arg4[%c0_13, %c0_14] : memref<1x128xf32, #tpu.memory_space<vmem>>, vector<1x128xf32>
      %14 = vector.broadcast %13 : vector<1x128xf32> to vector<128x128xf32>
      %15 = arith.addf %12, %14 : vector<128x128xf32>
      %cst_15 = arith.constant 0.000000e+00 : f32
      %16 = vector.broadcast %cst_15 : f32 to vector<128x128xf32>
      %17 = arith.maximumf %15, %16 : vector<128x128xf32>
      %c0_16 = arith.constant 0 : index
      %c0_17 = arith.constant 0 : index
      %18 = vector.load %arg8[%c0_16, %c0_17] : memref<128x128xf32, #tpu.memory_space<vmem>>, vector<128x128xf32>
      tpu.vector_store %arg8[%c0_16, %c0_17], %17 {strides = array<i32>} : memref<128x128xf32, #tpu.memory_space<vmem>>, vector<128x128xf32>,
    } else {
    }
    %c0 = arith.constant 0 : index
    %c0_1 = arith.constant 0 : index
    %3 = vector.load %arg8[%c0, %c0_1] : memref<128x128xf32, #tpu.memory_space<vmem>>, vector<128x128xf32>
    %c0_2 = arith.constant 0 : index
    %c0_3 = arith.constant 0 : index
    %4 = vector.load %arg5[%c0_2, %c0_3] : memref<128x128xf32, #tpu.memory_space<vmem>>, vector<128x128xf32>
    %cst = arith.constant dense<0.000000e+00> : vector<128x128xf32>
    %5 = tpu.matmul %3, %4, %cst {dimension_numbers = #tpu.dot_dimension_numbers<[1], [0], [0], [1], [0, 0, 1, 1], [], []>} : vector<128x128xf32>, vector<128x128xf32>, vector<128x128xf32> -> vector<128x128xf32>
    %c0_4 = arith.constant 0 : index
    %c0_5 = arith.constant 0 : index
    %6 = vector.load %arg6[%c0_4, %c0_5] : memref<1x128xf32, #tpu.memory_space<vmem>>, vector<1x128xf32>
    %7 = vector.broadcast %6 : vector<1x128xf32> to vector<128x128xf32>
    %8 = arith.addf %5, %7 : vector<128x128xf32>
    %c0_6 = arith.constant 0 : index
    %c0_7 = arith.constant 0 : index
    %9 = vector.load %arg7[%c0_6, %c0_7] : memref<128x128xf32, #tpu.memory_space<vmem>>, vector<128x128xf32>
    tpu.vector_store %arg7[%c0_6, %c0_7], %8 {strides = array<i32>} : memref<128x128xf32, #tpu.memory_space<vmem>>, vector<128x128xf32>,
    return
  }
  func.func @transform_0(%arg0: i32, %arg1: i32) -> (i32, i32) {
    %c0_i32 = arith.constant 0 : i32
    %c0_i32_0 = arith.constant 0 : i32
    return %arg0, %c0_i32 : i32, i32
  }
  func.func @transform_1(%arg0: i32, %arg1: i32) -> (i32, i32) {
    %c0_i32 = arith.constant 0 : i32
    %c0_i32_0 = arith.constant 0 : i32
    %c0_i32_1 = arith.constant 0 : i32
    return %c0_i32, %c0_i32_0 : i32, i32
  }
  func.func @transform_2(%arg0: i32, %arg1: i32) -> (i32, i32) {
    %c0_i32 = arith.constant 0 : i32
    %c0_i32_0 = arith.constant 0 : i32
    %c0_i32_1 = arith.constant 0 : i32
    return %c0_i32, %c0_i32_0 : i32, i32
  }
  func.func @transform_3(%arg0: i32, %arg1: i32) -> (i32, i32) {
    %c0_i32 = arith.constant 0 : i32
    %c0_i32_0 = arith.constant 0 : i32
    return %c0_i32, %arg1 : i32, i32
  }
  func.func @transform_4(%arg0: i32, %arg1: i32) -> (i32, i32) {
    %c0_i32 = arith.constant 0 : i32
    %c0_i32_0 = arith.constant 0 : i32
    return %c0_i32, %arg1 : i32, i32
  }
  func.func @transform_5(%arg0: i32, %arg1: i32) -> (i32, i32) {
    %c0_i32 = arith.constant 0 : i32
    return %arg0, %arg1 : i32, i32
  }
}

module attributes {stable_mosaic.version = 11 : i64} {
  func.func @mlp_kernel(%arg0: i32, %arg1: i32, %arg2: memref<128x128xf32, #tpu.memory_space<vmem>>, %arg3: memref<128x128xf32, #tpu.memory_space<vmem>>, %arg4: memref<1x128xf32, #tpu.memory_space<vmem>>, %arg5: memref<128x128xf32, #tpu.memory_space<vmem>>, %arg6: memref<1x128xf32, #tpu.memory_space<vmem>>, %arg7: memref<128x128xf32, #tpu.memory_space<vmem>>, %arg8: memref<128x128xf32, #tpu.memory_space<vmem>>) attributes {dimension_semantics = [#tpu.dimension_semantics<parallel>, #tpu.dimension_semantics<arbitrary>], iteration_bounds = array<i64: 1, 1>, scalar_prefetch = 0 : i64, scratch_operands = 1 : i64, tpu.core_type = #tpu.core_type<tc>, window_params = [{transform_indices = @transform_0, window_bounds = array<i64: 128, 128>}, {pipeline_mode = #tpu.pipeline_mode<synchronous>, transform_indices = @transform_1, window_bounds = array<i64: 128, 128>}, {pipeline_mode = #tpu.pipeline_mode<synchronous>, transform_indices = @transform_2, window_bounds = array<i64: 1, 128>}, {transform_indices = @transform_3, window_bounds = array<i64: 128, 128>}, {transform_indices = @transform_4, window_bounds = array<i64: 1, 128>}, {transform_indices = @transform_5, window_bounds = array<i64: 128, 128>}]} {
    %c0_i32 = arith.constant 0 : i32
    %0 = arith.cmpi eq, %arg1, %c0_i32 : i32
    %1 = arith.extui %0 : i1 to i32
    %c0_i32_0 = arith.constant 0 : i32
    %2 = arith.cmpi ne, %1, %c0_i32_0 : i32
    scf.if %2 {
      %c0_8 = arith.constant 0 : index
      %c0_9 = arith.constant 0 : index
      %10 = vector.load %arg2[%c0_8, %c0_9] : memref<128x128xf32, #tpu.memory_space<vmem>>, vector<128x128xf32>
      %c0_10 = arith.constant 0 : index
      %c0_11 = arith.constant 0 : index
      %11 = vector.load %arg3[%c0_10, %c0_11] : memref<128x128xf32, #tpu.memory_space<vmem>>, vector<128x128xf32>
      %cst_12 = arith.constant dense<0.000000e+00> : vector<128x128xf32>
      %12 = tpu.matmul %10, %11, %cst_12 {dimension_numbers = #tpu.dot_dimension_numbers<[1], [0], [0], [1], [0, 0, 1, 1], [], []>} : vector<128x128xf32>, vector<128x128xf32>, vector<128x128xf32> -> vector<128x128xf32>
      %c0_13 = arith.constant 0 : index
      %c0_14 = arith.constant 0 : index
      %13 = vector.load %arg4[%c0_13, %c0_14] : memref<1x128xf32, #tpu.memory_space<vmem>>, vector<1x128xf32>
      %14 = vector.broadcast %13 : vector<1x128xf32> to vector<128x128xf32>
      %15 = arith.addf %12, %14 : vector<128x128xf32>
      %cst_15 = arith.constant 0.000000e+00 : f32
      %16 = vector.broadcast %cst_15 : f32 to vector<128x128xf32>
      %17 = arith.maximumf %15, %16 : vector<128x128xf32>
      %c0_16 = arith.constant 0 : index
      %c0_17 = arith.constant 0 : index
      %18 = vector.load %arg8[%c0_16, %c0_17] : memref<128x128xf32, #tpu.memory_space<vmem>>, vector<128x128xf32>
      tpu.vector_store %arg8[%c0_16, %c0_17], %17 {strides = array<i32>} : memref<128x128xf32, #tpu.memory_space<vmem>>, vector<128x128xf32>,
    } else {
    }
    %c0 = arith.constant 0 : index
    %c0_1 = arith.constant 0 : index
    %3 = vector.load %arg8[%c0, %c0_1] : memref<128x128xf32, #tpu.memory_space<vmem>>, vector<128x128xf32>
    %c0_2 = arith.constant 0 : index
    %c0_3 = arith.constant 0 : index
    %4 = vector.load %arg5[%c0_2, %c0_3] : memref<128x128xf32, #tpu.memory_space<vmem>>, vector<128x128xf32>
    %cst = arith.constant dense<0.000000e+00> : vector<128x128xf32>
    %5 = tpu.matmul %3, %4, %cst {dimension_numbers = #tpu.dot_dimension_numbers<[1], [0], [0], [1], [0, 0, 1, 1], [], []>} : vector<128x128xf32>, vector<128x128xf32>, vector<128x128xf32> -> vector<128x128xf32>
    %c0_4 = arith.constant 0 : index
    %c0_5 = arith.constant 0 : index
    %6 = vector.load %arg6[%c0_4, %c0_5] : memref<1x128xf32, #tpu.memory_space<vmem>>, vector<1x128xf32>
    %7 = vector.broadcast %6 : vector<1x128xf32> to vector<128x128xf32>
    %8 = arith.addf %5, %7 : vector<128x128xf32>
    %c0_6 = arith.constant 0 : index
    %c0_7 = arith.constant 0 : index
    %9 = vector.load %arg7[%c0_6, %c0_7] : memref<128x128xf32, #tpu.memory_space<vmem>>, vector<128x128xf32>
    tpu.vector_store %arg7[%c0_6, %c0_7], %8 {strides = array<i32>} : memref<128x128xf32, #tpu.memory_space<vmem>>, vector<128x128xf32>,
    return
  }
  func.func @transform_0(%arg0: i32, %arg1: i32) -> (i32, i32) {
    %c0_i32 = arith.constant 0 : i32
    %c0_i32_0 = arith.constant 0 : i32
    return %arg0, %c0_i32 : i32, i32
  }
  func.func @transform_1(%arg0: i32, %arg1: i32) -> (i32, i32) {
    %c0_i32 = arith.constant 0 : i32
    %c0_i32_0 = arith.constant 0 : i32
    %c0_i32_1 = arith.constant 0 : i32
    return %c0_i32, %c0_i32_0 : i32, i32
  }
  func.func @transform_2(%arg0: i32, %arg1: i32) -> (i32, i32) {
    %c0_i32 = arith.constant 0 : i32
    %c0_i32_0 = arith.constant 0 : i32
    %c0_i32_1 = arith.constant 0 : i32
    return %c0_i32, %c0_i32_0 : i32, i32
  }
  func.func @transform_3(%arg0: i32, %arg1: i32) -> (i32, i32) {
    %c0_i32 = arith.constant 0 : i32
    %c0_i32_0 = arith.constant 0 : i32
    return %c0_i32, %arg1 : i32, i32
  }
  func.func @transform_4(%arg0: i32, %arg1: i32) -> (i32, i32) {
    %c0_i32 = arith.constant 0 : i32
    %c0_i32_0 = arith.constant 0 : i32
    return %c0_i32, %arg1 : i32, i32
  }
  func.func @transform_5(%arg0: i32, %arg1: i32) -> (i32, i32) {
    %c0_i32 = arith.constant 0 : i32
    return %arg0, %arg1 : i32, i32
  }
}

</mosaic_0001>

<llo_original>
// kernel: tpu_custom_call.1
$region0: #{tpu_custom_call.1}
  #allocation0 [shape = 'u32[]', space=smem, size = 0x4, offset = 0x4, fixed_abs, tag = 'smem constant byte address 0x4 - core index']
  #allocation1 [shape = 'u32[144,128]{1,0:T(1,128)}', space=vmem, size = 0x12000, scoped, tag = 'internal scratch']
  #allocation2 [shape = 'f32[128,128]{1,0:T(8,128)}', space=vmem, size = 0x10000, scoped, tag = 'scratch operand']
  %s0 = inlined_call_operand.hbm [shape: f32[128,128], index: 0, kind: input, shape index: {}]
  %s1 = inlined_call_operand.hbm [shape: f32[128,128], index: 1, kind: input, shape index: {}]
  %s2 = inlined_call_operand.vmem [shape: f32[1,128], index: 2, kind: input, shape index: {}]
  %s3 = inlined_call_operand.hbm [shape: f32[128,128], index: 3, kind: input, shape index: {}]
  %s4 = inlined_call_operand.vmem [shape: f32[1,128], index: 4, kind: input, shape index: {}]
  %s5 = inlined_call_operand.hbm [shape: f32[128,128], index: 5, kind: output, shape index: {}]
  %s6 = sld [smem:[#allocation0]]
  $region46: #{tpu_custom_call.1} parent=0
    _
  %s8 = ssub.s32 1, %s6
  %s9 = scalar_select 0, %s8, %s6
  $region1: #{tpu_custom_call.1} parent=0
    #allocation3 [shape = 'u8[65536]{0}', space=vmem, size = 0x10000, scoped, tag = 'input window, operand 0, single buffered']
    #allocation4 [shape = 's32[1]{0}', space=sflag, size = 0x4, scoped, tag = 'scoped memory for tpu_custom_call.1']
    #allocation5 [shape = 's32[1]{0}', space=sflag, size = 0x4, scoped, tag = 'scoped memory for tpu_custom_call.1']
    #allocation6 [shape = 'u8[65536]{0}', space=vmem, size = 0x10000, scoped, tag = 'input window, operand 1, single buffered']
    #allocation7 [shape = 's32[1]{0}', space=sflag, size = 0x4, scoped, tag = 'scoped memory for tpu_custom_call.1']
    #allocation8 [shape = 'u8[65536]{0}', space=vmem, size = 0x10000, scoped, tag = 'input window, operand 3, single buffered']
    #allocation9 [shape = 'u8[65536]{0}', space=vmem, size = 0x10000, scoped, tag = 'output window, operand 0, single buffered']
    %10 = vsyncpa [#allocation4], 0
    %11 = vsyncpa [#allocation7], 0
    %12 = vsyncpa [#allocation5], 0
    // Predicated region
    $region2: #{tpu_custom_call.1} parent=1 // pred_check
      _
    $region3: #{tpu_custom_call.1} parent=1 // pred_check_branch
      %14 = sbr.rel (0) target = $region5
    $region4: #{tpu_custom_call.1} parent=1 // pred_region
      %s16 = ssub.s32 2048, 2048
      %17 = vsyncadd [#allocation4], %s16
      %s18 = sshll.u32 [#allocation3], 4
      %s19 = int_to_ptr.vmem [resolvable:$true] %s18
      %24 = dma.hbm_to_vmem [thread:$0]  %s0, 2048, %s19, [#allocation4], 128, 128, 8
    $region5: #{tpu_custom_call.1} parent=1 // pred_fallthru
      _
    // Predicated region
    $region6: #{tpu_custom_call.1} parent=1 // pred_check
      _
    $region7: #{tpu_custom_call.1} parent=1 // pred_check_branch
      %26 = sbr.rel (0) target = $region9
    $region8: #{tpu_custom_call.1} parent=1 // pred_region
      %s28 = ssub.s32 2048, 2048
      %29 = vsyncadd [#allocation7], %s28
      %s30 = sshll.u32 [#allocation6], 4
      %s31 = int_to_ptr.vmem [resolvable:$true] %s30
      %36 = dma.hbm_to_vmem [thread:$0]  %s1, 2048, %s31, [#allocation7], 128, 128, 8
    $region9: #{tpu_custom_call.1} parent=1 // pred_fallthru
      _
    // Predicated region
    $region10: #{tpu_custom_call.1} parent=1 // pred_check
      _
    $region11: #{tpu_custom_call.1} parent=1 // pred_check_branch
      %38 = sbr.rel (0) target = $region13
    $region12: #{tpu_custom_call.1} parent=1 // pred_region
      _
    $region13: #{tpu_custom_call.1} parent=1 // pred_fallthru
      _
    // Predicated region
    $region14: #{tpu_custom_call.1} parent=1 // pred_check
      _
    $region15: #{tpu_custom_call.1} parent=1 // pred_check_branch
      %40 = sbr.rel (0) target = $region17
    $region16: #{tpu_custom_call.1} parent=1 // pred_region
      %s42 = ssub.s32 2048, 2048
      %43 = vsyncadd [#allocation7], %s42
      %s44 = sshll.u32 [#allocation8], 4
      %s45 = int_to_ptr.vmem [resolvable:$true] %s44
      %50 = dma.hbm_to_vmem [thread:$0]  %s3, 2048, %s45, [#allocation7], 128, 128, 8
    $region17: #{tpu_custom_call.1} parent=1 // pred_fallthru
      _
    // Predicated region
    $region18: #{tpu_custom_call.1} parent=1 // pred_check
      _
    $region19: #{tpu_custom_call.1} parent=1 // pred_check_branch
      %52 = sbr.rel (0) target = $region21
    $region20: #{tpu_custom_call.1} parent=1 // pred_region
      _
    $region21: #{tpu_custom_call.1} parent=1 // pred_fallthru
      _
    // Predicated region
    $region22: #{tpu_custom_call.1} parent=1 // pred_check
      _
    $region23: #{tpu_custom_call.1} parent=1 // pred_check_branch
      %54 = sbr.rel (0) target = $region25
    $region24: #{tpu_custom_call.1} parent=1 // pred_region
      %55 = dma.done [#allocation4], 2048
    $region25: #{tpu_custom_call.1} parent=1 // pred_fallthru
      _
    // Predicated region
    $region26: #{tpu_custom_call.1} parent=1 // pred_check
      _
    $region27: #{tpu_custom_call.1} parent=1 // pred_check_branch
      %57 = sbr.rel (0) target = $region29
    $region28: #{tpu_custom_call.1} parent=1 // pred_region
      %58 = dma.done [#allocation7], 2048
    $region29: #{tpu_custom_call.1} parent=1 // pred_fallthru
      _
    // Predicated region
    $region30: #{tpu_custom_call.1} parent=1 // pred_check
      _
    $region31: #{tpu_custom_call.1} parent=1 // pred_check_branch
      %60 = sbr.rel (0) target = $region33
    $region32: #{tpu_custom_call.1} parent=1 // pred_region
      %61 = dma.done [#allocation7], 2048
    $region33: #{tpu_custom_call.1} parent=1 // pred_fallthru
      _
    %p62 = scmp.eq.s32.totalorder 0, 0
    // Predicated region
    $region34: #{tpu_custom_call.1} parent=1 // pred_check
      %p63 = pneg %p62
    $region35: #{tpu_custom_call.1} parent=1 // pred_check_branch
      %65 = sbr.rel (%p63) target = $region37
    $region36: #{tpu_custom_call.1} parent=1 // pred_region
      %v66 = vld [vmem:[#allocation3] sm:$0xff]
      %v67 = vld [vmem:[#allocation3 + $0x8] sm:$0xff]
      %v68 = vld [vmem:[#allocation3 + $0x10] sm:$0xff]
      %v69 = vld [vmem:[#allocation3 + $0x18] sm:$0xff]
      %v70 = vld [vmem:[#allocation3 + $0x20] sm:$0xff]
      %v71 = vld [vmem:[#allocation3 + $0x28] sm:$0xff]
      %v72 = vld [vmem:[#allocation3 + $0x30] sm:$0xff]
      %v73 = vld [vmem:[#allocation3 + $0x38] sm:$0xff]
      %v74 = vld [vmem:[#allocation3 + $0x40] sm:$0xff]
      %v75 = vld [vmem:[#allocation3 + $0x48] sm:$0xff]
      %v76 = vld [vmem:[#allocation3 + $0x50] sm:$0xff]
      %v77 = vld [vmem:[#allocation3 + $0x58] sm:$0xff]
      %v78 = vld [vmem:[#allocation3 + $0x60] sm:$0xff]
      %v79 = vld [vmem:[#allocation3 + $0x68] sm:$0xff]
      %v80 = vld [vmem:[#allocation3 + $0x70] sm:$0xff]
      %v81 = vld [vmem:[#allocation3 + $0x78] sm:$0xff]
      %v82 = vld [vmem:[#allocation6] sm:$0xff]
      %v83 = vld [vmem:[#allocation6 + $0x8] sm:$0xff]
      %v84 = vld [vmem:[#allocation6 + $0x10] sm:$0xff]
      %v85 = vld [vmem:[#allocation6 + $0x18] sm:$0xff]
      %v86 = vld [vmem:[#allocation6 + $0x20] sm:$0xff]
      %v87 = vld [vmem:[#allocation6 + $0x28] sm:$0xff]
      %v88 = vld [vmem:[#allocation6 + $0x30] sm:$0xff]
      %v89 = vld [vmem:[#allocation6 + $0x38] sm:$0xff]
      %v90 = vld [vmem:[#allocation6 + $0x40] sm:$0xff]
      %v91 = vld [vmem:[#allocation6 + $0x48] sm:$0xff]
      %v92 = vld [vmem:[#allocation6 + $0x50] sm:$0xff]
      %v93 = vld [vmem:[#allocation6 + $0x58] sm:$0xff]
      %v94 = vld [vmem:[#allocation6 + $0x60] sm:$0xff]
      %v95 = vld [vmem:[#allocation6 + $0x68] sm:$0xff]
      %v96 = vld [vmem:[#allocation6 + $0x70] sm:$0xff]
      %v97 = vld [vmem:[#allocation6 + $0x78] sm:$0xff]
      %v98 = vld [vmem:[%s2] sm:$0x1]
      %v100 = vlaneseq
      %v101 = vshrl.u32 %v100, 7
      %v102 = vsub.s32 0, %v101
      %v103 = vrot.slane %v98, %v102
      %105 = vmatprep.subr.mxu0 0.0
      %106 = vmatpush1.msra.mxu0 %v97
      %107 = vmatprep.subr.mxu0 0.0
      %108 = vmatpush1.msra.mxu0 %v96
      %109 = vmatprep.subr.mxu0 0.0
      %110 = vmatpush1.msra.mxu0 %v95
      %111 = vmatprep.subr.mxu0 0.0
      %112 = vmatpush1.msra.mxu0 %v94
      %113 = vmatprep.subr.mxu0 0.0
      %114 = vmatpush1.msra.mxu0 %v93
      %115 = vmatprep.subr.mxu0 0.0
      %116 = vmatpush1.msra.mxu0 %v92
      %117 = vmatprep.subr.mxu0 0.0
      %118 = vmatpush1.msra.mxu0 %v91
      %119 = vmatprep.subr.mxu0 0.0
      %120 = vmatpush1.msra.mxu0 %v90
      %121 = vmatprep.subr.mxu0 0.0
      %122 = vmatpush1.msra.mxu0 %v89
      %123 = vmatprep.subr.mxu0 0.0
      %124 = vmatpush1.msra.mxu0 %v88
      %125 = vmatprep.subr.mxu0 0.0
      %126 = vmatpush1.msra.mxu0 %v87
      %127 = vmatprep.subr.mxu0 0.0
      %128 = vmatpush1.msra.mxu0 %v86
      %129 = vmatprep.subr.mxu0 0.0
      %130 = vmatpush1.msra.mxu0 %v85
      %131 = vmatprep.subr.mxu0 0.0
      %132 = vmatpush1.msra.mxu0 %v84
      %133 = vmatprep.subr.mxu0 0.0
      %134 = vmatpush1.msra.mxu0 %v83
      %135 = vmatprep.subr.mxu0 0.0
      %136 = vmatpush1.msra.mxu0 %v82
      %137 = vmatprep.subr.mxu0 0.0
      %138 = vmatpush2.msra.mxu0 0.0
      %139 = vmatprep.subr.mxu0 0.0
      %140 = vmatpush2.msra.mxu0 0.0
      %141 = vmatprep.subr.mxu0 0.0
      %142 = vmatpush2.msra.mxu0 0.0
      %143 = vmatprep.subr.mxu0 0.0
      %144 = vmatpush2.msra.mxu0 0.0
      %145 = vmatprep.subr.mxu0 0.0
      %146 = vmatpush2.msra.mxu0 0.0
      %147 = vmatprep.subr.mxu0 0.0
      %148 = vmatpush2.msra.mxu0 0.0
      %149 = vmatprep.subr.mxu0 0.0
      %150 = vmatpush2.msra.mxu0 0.0
      %151 = vmatprep.subr.mxu0 0.0
      %152 = vmatpush2.msra.mxu0 0.0
      %153 = vmatprep.subr.mxu0 0.0
      %154 = vmatpush2.msra.mxu0 0.0
      %155 = vmatprep.subr.mxu0 0.0
      %156 = vmatpush2.msra.mxu0 0.0
      %157 = vmatprep.subr.mxu0 0.0
      %158 = vmatpush2.msra.mxu0 0.0
      %159 = vmatprep.subr.mxu0 0.0
      %160 = vmatpush2.msra.mxu0 0.0
      %161 = vmatprep.subr.mxu0 0.0
      %162 = vmatpush2.msra.mxu0 0.0
      %163 = vmatprep.subr.mxu0 0.0
      %164 = vmatpush2.msra.mxu0 0.0
      %165 = vmatprep.subr.mxu0 0.0
      %166 = vmatpush2.msra.mxu0 0.0
      %167 = vmatprep.subr.mxu0 0.0
      %168 = vmatpush2.msra.mxu0 0.0
      %169 = vmatprep.mubr.f32.mxu0 0.0
      %170 = vmatmul.mubr.f32.gmra.mxu0 %v66
      %v171 = vpop.f32.mrf.mxu0
      %v172 = vadd.f32 %v103, %v171
      %v173 = vpop.f32.mrf.mxu0
      %174 = vmatprep.mubr.f32.mxu0 0.0
      %175 = vmatmul.mubr.f32.gmra.mxu0 %v67
      %v176 = vpop.f32.mrf.mxu0
      %v177 = vadd.f32 %v103, %v176
      %v178 = vpop.f32.mrf.mxu0
      %179 = vmatprep.mubr.f32.mxu0 0.0
      %180 = vmatmul.mubr.f32.gmra.mxu0 %v68
      %v181 = vpop.f32.mrf.mxu0
      %v182 = vadd.f32 %v103, %v181
      %v183 = vpop.f32.mrf.mxu0
      %184 = vmatprep.mubr.f32.mxu0 0.0
      %185 = vmatmul.mubr.f32.gmra.mxu0 %v69
      %v186 = vpop.f32.mrf.mxu0
      %v187 = vadd.f32 %v103, %v186
      %v188 = vpop.f32.mrf.mxu0
      %189 = vmatprep.mubr.f32.mxu0 0.0
      %190 = vmatmul.mubr.f32.gmra.mxu0 %v70
      %v191 = vpop.f32.mrf.mxu0
      %v192 = vadd.f32 %v103, %v191
      %v193 = vpop.f32.mrf.mxu0
      %194 = vmatprep.mubr.f32.mxu0 0.0
      %195 = vmatmul.mubr.f32.gmra.mxu0 %v71
      %v196 = vpop.f32.mrf.mxu0
      %v197 = vadd.f32 %v103, %v196
      %v198 = vpop.f32.mrf.mxu0
      %199 = vmatprep.mubr.f32.mxu0 0.0
      %200 = vmatmul.mubr.f32.gmra.mxu0 %v72
      %v201 = vpop.f32.mrf.mxu0
      %v202 = vadd.f32 %v103, %v201
      %v203 = vpop.f32.mrf.mxu0
      %204 = vmatprep.mubr.f32.mxu0 0.0
      %205 = vmatmul.mubr.f32.gmra.mxu0 %v73
      %v206 = vpop.f32.mrf.mxu0
      %v207 = vadd.f32 %v103, %v206
      %v208 = vpop.f32.mrf.mxu0
      %209 = vmatprep.mubr.f32.mxu0 0.0
      %210 = vmatmul.mubr.f32.gmra.mxu0 %v74
      %v211 = vpop.f32.mrf.mxu0
      %v212 = vadd.f32 %v103, %v211
      %v213 = vpop.f32.mrf.mxu0
      %214 = vmatprep.mubr.f32.mxu0 0.0
      %215 = vmatmul.mubr.f32.gmra.mxu0 %v75
      %v216 = vpop.f32.mrf.mxu0
      %v217 = vadd.f32 %v103, %v216
      %v218 = vpop.f32.mrf.mxu0
      %219 = vmatprep.mubr.f32.mxu0 0.0
      %220 = vmatmul.mubr.f32.gmra.mxu0 %v76
      %v221 = vpop.f32.mrf.mxu0
      %v222 = vadd.f32 %v103, %v221
      %v223 = vpop.f32.mrf.mxu0
      %224 = vmatprep.mubr.f32.mxu0 0.0
      %225 = vmatmul.mubr.f32.gmra.mxu0 %v77
      %v226 = vpop.f32.mrf.mxu0
      %v227 = vadd.f32 %v103, %v226
      %v228 = vpop.f32.mrf.mxu0
      %229 = vmatprep.mubr.f32.mxu0 0.0
      %230 = vmatmul.mubr.f32.gmra.mxu0 %v78
      %v231 = vpop.f32.mrf.mxu0
      %v232 = vadd.f32 %v103, %v231
      %v233 = vpop.f32.mrf.mxu0
      %234 = vmatprep.mubr.f32.mxu0 0.0
      %235 = vmatmul.mubr.f32.gmra.mxu0 %v79
      %v236 = vpop.f32.mrf.mxu0
      %v237 = vadd.f32 %v103, %v236
      %v238 = vpop.f32.mrf.mxu0
      %239 = vmatprep.mubr.f32.mxu0 0.0
      %240 = vmatmul.mubr.f32.gmra.mxu0 %v80
      %v241 = vpop.f32.mrf.mxu0
      %v242 = vadd.f32 %v103, %v241
      %v243 = vpop.f32.mrf.mxu0
      %244 = vmatprep.mubr.f32.mxu0 0.0
      %245 = vmatmul.mubr.f32.gmra.mxu0 %v81
      %v246 = vpop.f32.mrf.mxu0
      %v247 = vadd.f32 %v103, %v246
      %v248 = vpop.f32.mrf.mxu0
      %249 = vdwg.mxu0
      %v250 = vmax.f32 %v172, 0.0
      %v251 = vmax.f32 %v177, 0.0
      %v252 = vmax.f32 %v182, 0.0
      %v253 = vmax.f32 %v187, 0.0
      %v254 = vmax.f32 %v192, 0.0
      %v255 = vmax.f32 %v197, 0.0
      %v256 = vmax.f32 %v202, 0.0
      %v257 = vmax.f32 %v207, 0.0
      %v258 = vmax.f32 %v212, 0.0
      %v259 = vmax.f32 %v217, 0.0
      %v260 = vmax.f32 %v222, 0.0
      %v261 = vmax.f32 %v227, 0.0
      %v262 = vmax.f32 %v232, 0.0
      %v263 = vmax.f32 %v237, 0.0
      %v264 = vmax.f32 %v242, 0.0
      %v265 = vmax.f32 %v247, 0.0
      %266 = vst [vmem:[#allocation2] sm:$0xff] %v250
      %267 = vst [vmem:[#allocation2 + $0x8] sm:$0xff] %v251
      %268 = vst [vmem:[#allocation2 + $0x10] sm:$0xff] %v252
      %269 = vst [vmem:[#allocation2 + $0x18] sm:$0xff] %v253
      %270 = vst [vmem:[#allocation2 + $0x20] sm:$0xff] %v254
      %271 = vst [vmem:[#allocation2 + $0x28] sm:$0xff] %v255
      %272 = vst [vmem:[#allocation2 + $0x30] sm:$0xff] %v256
      %273 = vst [vmem:[#allocation2 + $0x38] sm:$0xff] %v257
      %274 = vst [vmem:[#allocation2 + $0x40] sm:$0xff] %v258
      %275 = vst [vmem:[#allocation2 + $0x48] sm:$0xff] %v259
      %276 = vst [vmem:[#allocation2 + $0x50] sm:$0xff] %v260
      %277 = vst [vmem:[#allocation2 + $0x58] sm:$0xff] %v261
      %278 = vst [vmem:[#allocation2 + $0x60] sm:$0xff] %v262
      %279 = vst [vmem:[#allocation2 + $0x68] sm:$0xff] %v263
      %280 = vst [vmem:[#allocation2 + $0x70] sm:$0xff] %v264
      %281 = vst [vmem:[#allocation2 + $0x78] sm:$0xff] %v265
    $region37: #{tpu_custom_call.1} parent=1 // pred_fallthru
      _
    %v282 = vld [vmem:[#allocation2] sm:$0xff]
    %v283 = vld [vmem:[#allocation2 + $0x8] sm:$0xff]
    %v284 = vld [vmem:[#allocation2 + $0x10] sm:$0xff]
    %v285 = vld [vmem:[#allocation2 + $0x18] sm:$0xff]
    %v286 = vld [vmem:[#allocation2 + $0x20] sm:$0xff]
    %v287 = vld [vmem:[#allocation2 + $0x28] sm:$0xff]
    %v288 = vld [vmem:[#allocation2 + $0x30] sm:$0xff]
    %v289 = vld [vmem:[#allocation2 + $0x38] sm:$0xff]
    %v290 = vld [vmem:[#allocation2 + $0x40] sm:$0xff]
    %v291 = vld [vmem:[#allocation2 + $0x48] sm:$0xff]
    %v292 = vld [vmem:[#allocation2 + $0x50] sm:$0xff]
    %v293 = vld [vmem:[#allocation2 + $0x58] sm:$0xff]
    %v294 = vld [vmem:[#allocation2 + $0x60] sm:$0xff]
    %v295 = vld [vmem:[#allocation2 + $0x68] sm:$0xff]
    %v296 = vld [vmem:[#allocation2 + $0x70] sm:$0xff]
    %v297 = vld [vmem:[#allocation2 + $0x78] sm:$0xff]
    %v298 = vld [vmem:[#allocation8] sm:$0xff]
    %v299 = vld [vmem:[#allocation8 + $0x8] sm:$0xff]
    %v300 = vld [vmem:[#allocation8 + $0x10] sm:$0xff]
    %v301 = vld [vmem:[#allocation8 + $0x18] sm:$0xff]
    %v302 = vld [vmem:[#allocation8 + $0x20] sm:$0xff]
    %v303 = vld [vmem:[#allocation8 + $0x28] sm:$0xff]
    %v304 = vld [vmem:[#allocation8 + $0x30] sm:$0xff]
    %v305 = vld [vmem:[#allocation8 + $0x38] sm:$0xff]
    %v306 = vld [vmem:[#allocation8 + $0x40] sm:$0xff]
    %v307 = vld [vmem:[#allocation8 + $0x48] sm:$0xff]
    %v308 = vld [vmem:[#allocation8 + $0x50] sm:$0xff]
    %v309 = vld [vmem:[#allocation8 + $0x58] sm:$0xff]
    %v310 = vld [vmem:[#allocation8 + $0x60] sm:$0xff]
    %v311 = vld [vmem:[#allocation8 + $0x68] sm:$0xff]
    %v312 = vld [vmem:[#allocation8 + $0x70] sm:$0xff]
    %v313 = vld [vmem:[#allocation8 + $0x78] sm:$0xff]
    %v314 = vld [vmem:[%s4] sm:$0x1]
    %v316 = vlaneseq
    %v317 = vshrl.u32 %v316, 7
    %v318 = vsub.s32 0, %v317
    %v319 = vrot.slane %v314, %v318
    %321 = vmatprep.subr.mxu0 0.0
    %322 = vmatpush1.msra.mxu0 %v313
    %323 = vmatprep.subr.mxu0 0.0
    %324 = vmatpush1.msra.mxu0 %v312
    %325 = vmatprep.subr.mxu0 0.0
    %326 = vmatpush1.msra.mxu0 %v311
    %327 = vmatprep.subr.mxu0 0.0
    %328 = vmatpush1.msra.mxu0 %v310
    %329 = vmatprep.subr.mxu0 0.0
    %330 = vmatpush1.msra.mxu0 %v309
    %331 = vmatprep.subr.mxu0 0.0
    %332 = vmatpush1.msra.mxu0 %v308
    %333 = vmatprep.subr.mxu0 0.0
    %334 = vmatpush1.msra.mxu0 %v307
    %335 = vmatprep.subr.mxu0 0.0
    %336 = vmatpush1.msra.mxu0 %v306
    %337 = vmatprep.subr.mxu0 0.0
    %338 = vmatpush1.msra.mxu0 %v305
    %339 = vmatprep.subr.mxu0 0.0
    %340 = vmatpush1.msra.mxu0 %v304
    %341 = vmatprep.subr.mxu0 0.0
    %342 = vmatpush1.msra.mxu0 %v303
    %343 = vmatprep.subr.mxu0 0.0
    %344 = vmatpush1.msra.mxu0 %v302
    %345 = vmatprep.subr.mxu0 0.0
    %346 = vmatpush1.msra.mxu0 %v301
    %347 = vmatprep.subr.mxu0 0.0
    %348 = vmatpush1.msra.mxu0 %v300
    %349 = vmatprep.subr.mxu0 0.0
    %350 = vmatpush1.msra.mxu0 %v299
    %351 = vmatprep.subr.mxu0 0.0
    %352 = vmatpush1.msra.mxu0 %v298
    %353 = vmatprep.subr.mxu0 0.0
    %354 = vmatpush2.msra.mxu0 0.0
    %355 = vmatprep.subr.mxu0 0.0
    %356 = vmatpush2.msra.mxu0 0.0
    %357 = vmatprep.subr.mxu0 0.0
    %358 = vmatpush2.msra.mxu0 0.0
    %359 = vmatprep.subr.mxu0 0.0
    %360 = vmatpush2.msra.mxu0 0.0
    %361 = vmatprep.subr.mxu0 0.0
    %362 = vmatpush2.msra.mxu0 0.0
    %363 = vmatprep.subr.mxu0 0.0
    %364 = vmatpush2.msra.mxu0 0.0
    %365 = vmatprep.subr.mxu0 0.0
    %366 = vmatpush2.msra.mxu0 0.0
    %367 = vmatprep.subr.mxu0 0.0
    %368 = vmatpush2.msra.mxu0 0.0
    %369 = vmatprep.subr.mxu0 0.0
    %370 = vmatpush2.msra.mxu0 0.0
    %371 = vmatprep.subr.mxu0 0.0
    %372 = vmatpush2.msra.mxu0 0.0
    %373 = vmatprep.subr.mxu0 0.0
    %374 = vmatpush2.msra.mxu0 0.0
    %375 = vmatprep.subr.mxu0 0.0
    %376 = vmatpush2.msra.mxu0 0.0
    %377 = vmatprep.subr.mxu0 0.0
    %378 = vmatpush2.msra.mxu0 0.0
    %379 = vmatprep.subr.mxu0 0.0
    %380 = vmatpush2.msra.mxu0 0.0
    %381 = vmatprep.subr.mxu0 0.0
    %382 = vmatpush2.msra.mxu0 0.0
    %383 = vmatprep.subr.mxu0 0.0
    %384 = vmatpush2.msra.mxu0 0.0
    %385 = vmatprep.mubr.f32.mxu0 0.0
    %386 = vmatmul.mubr.f32.gmra.mxu0 %v282
    %v387 = vpop.f32.mrf.mxu0
    %v388 = vadd.f32 %v319, %v387
    %v389 = vpop.f32.mrf.mxu0
    %390 = vmatprep.mubr.f32.mxu0 0.0
    %391 = vmatmul.mubr.f32.gmra.mxu0 %v283
    %v392 = vpop.f32.mrf.mxu0
    %v393 = vadd.f32 %v319, %v392
    %v394 = vpop.f32.mrf.mxu0
    %395 = vmatprep.mubr.f32.mxu0 0.0
    %396 = vmatmul.mubr.f32.gmra.mxu0 %v284
    %v397 = vpop.f32.mrf.mxu0
    %v398 = vadd.f32 %v319, %v397
    %v399 = vpop.f32.mrf.mxu0
    %400 = vmatprep.mubr.f32.mxu0 0.0
    %401 = vmatmul.mubr.f32.gmra.mxu0 %v285
    %v402 = vpop.f32.mrf.mxu0
    %v403 = vadd.f32 %v319, %v402
    %v404 = vpop.f32.mrf.mxu0
    %405 = vmatprep.mubr.f32.mxu0 0.0
    %406 = vmatmul.mubr.f32.gmra.mxu0 %v286
    %v407 = vpop.f32.mrf.mxu0
    %v408 = vadd.f32 %v319, %v407
    %v409 = vpop.f32.mrf.mxu0
    %410 = vmatprep.mubr.f32.mxu0 0.0
    %411 = vmatmul.mubr.f32.gmra.mxu0 %v287
    %v412 = vpop.f32.mrf.mxu0
    %v413 = vadd.f32 %v319, %v412
    %v414 = vpop.f32.mrf.mxu0
    %415 = vmatprep.mubr.f32.mxu0 0.0
    %416 = vmatmul.mubr.f32.gmra.mxu0 %v288
    %v417 = vpop.f32.mrf.mxu0
    %v418 = vadd.f32 %v319, %v417
    %v419 = vpop.f32.mrf.mxu0
    %420 = vmatprep.mubr.f32.mxu0 0.0
    %421 = vmatmul.mubr.f32.gmra.mxu0 %v289
    %v422 = vpop.f32.mrf.mxu0
    %v423 = vadd.f32 %v319, %v422
    %v424 = vpop.f32.mrf.mxu0
    %425 = vmatprep.mubr.f32.mxu0 0.0
    %426 = vmatmul.mubr.f32.gmra.mxu0 %v290
    %v427 = vpop.f32.mrf.mxu0
    %v428 = vadd.f32 %v319, %v427
    %v429 = vpop.f32.mrf.mxu0
    %430 = vmatprep.mubr.f32.mxu0 0.0
    %431 = vmatmul.mubr.f32.gmra.mxu0 %v291
    %v432 = vpop.f32.mrf.mxu0
    %v433 = vadd.f32 %v319, %v432
    %v434 = vpop.f32.mrf.mxu0
    %435 = vmatprep.mubr.f32.mxu0 0.0
    %436 = vmatmul.mubr.f32.gmra.mxu0 %v292
    %v437 = vpop.f32.mrf.mxu0
    %v438 = vadd.f32 %v319, %v437
    %v439 = vpop.f32.mrf.mxu0
    %440 = vmatprep.mubr.f32.mxu0 0.0
    %441 = vmatmul.mubr.f32.gmra.mxu0 %v293
    %v442 = vpop.f32.mrf.mxu0
    %v443 = vadd.f32 %v319, %v442
    %v444 = vpop.f32.mrf.mxu0
    %445 = vmatprep.mubr.f32.mxu0 0.0
    %446 = vmatmul.mubr.f32.gmra.mxu0 %v294
    %v447 = vpop.f32.mrf.mxu0
    %v448 = vadd.f32 %v319, %v447
    %v449 = vpop.f32.mrf.mxu0
    %450 = vmatprep.mubr.f32.mxu0 0.0
    %451 = vmatmul.mubr.f32.gmra.mxu0 %v295
    %v452 = vpop.f32.mrf.mxu0
    %v453 = vadd.f32 %v319, %v452
    %v454 = vpop.f32.mrf.mxu0
    %455 = vmatprep.mubr.f32.mxu0 0.0
    %456 = vmatmul.mubr.f32.gmra.mxu0 %v296
    %v457 = vpop.f32.mrf.mxu0
    %v458 = vadd.f32 %v319, %v457
    %v459 = vpop.f32.mrf.mxu0
    %460 = vmatprep.mubr.f32.mxu0 0.0
    %461 = vmatmul.mubr.f32.gmra.mxu0 %v297
    %v462 = vpop.f32.mrf.mxu0
    %v463 = vadd.f32 %v319, %v462
    %v464 = vpop.f32.mrf.mxu0
    %465 = vdwg.mxu0
    %466 = vst [vmem:[#allocation9] sm:$0xff] %v388
    %467 = vst [vmem:[#allocation9 + $0x8] sm:$0xff] %v393
    %468 = vst [vmem:[#allocation9 + $0x10] sm:$0xff] %v398
    %469 = vst [vmem:[#allocation9 + $0x18] sm:$0xff] %v403
    %470 = vst [vmem:[#allocation9 + $0x20] sm:$0xff] %v408
    %471 = vst [vmem:[#allocation9 + $0x28] sm:$0xff] %v413
    %472 = vst [vmem:[#allocation9 + $0x30] sm:$0xff] %v418
    %473 = vst [vmem:[#allocation9 + $0x38] sm:$0xff] %v423
    %474 = vst [vmem:[#allocation9 + $0x40] sm:$0xff] %v428
    %475 = vst [vmem:[#allocation9 + $0x48] sm:$0xff] %v433
    %476 = vst [vmem:[#allocation9 + $0x50] sm:$0xff] %v438
    %477 = vst [vmem:[#allocation9 + $0x58] sm:$0xff] %v443
    %478 = vst [vmem:[#allocation9 + $0x60] sm:$0xff] %v448
    %479 = vst [vmem:[#allocation9 + $0x68] sm:$0xff] %v453
    %480 = vst [vmem:[#allocation9 + $0x70] sm:$0xff] %v458
    %481 = vst [vmem:[#allocation9 + $0x78] sm:$0xff] %v463
    // Predicated region
    $region38: #{tpu_custom_call.1} parent=1 // pred_check
      _
    $region39: #{tpu_custom_call.1} parent=1 // pred_check_branch
      %483 = sbr.rel (0) target = $region41
    $region40: #{tpu_custom_call.1} parent=1 // pred_region
      %s485 = ssub.s32 2048, 2048
      %486 = vsyncadd [#allocation5], %s485
      %s487 = sshll.u32 [#allocation9], 4
      %s488 = int_to_ptr.vmem [resolvable:$true] %s487
      %493 = dma.vmem_to_hbm [thread:$0]  %s488, 2048, %s5, [#allocation5], 128, 128, 8
    $region41: #{tpu_custom_call.1} parent=1 // pred_fallthru
      _
    // Predicated region
    $region42: #{tpu_custom_call.1} parent=1 // pred_check
      _
    $region43: #{tpu_custom_call.1} parent=1 // pred_check_branch
      %495 = sbr.rel (0) target = $region45
    $region44: #{tpu_custom_call.1} parent=1 // pred_region
      %496 = dma.done [#allocation5], 2048
    $region45: #{tpu_custom_call.1} parent=1 // pred_fallthru
      _
    %497 = vsyncpa [#allocation4], 1
    %498 = vsyncpa [#allocation7], 1
    %499 = vsyncpa [#allocation5], 1

// kernel: tpu_custom_call.1
$region0: #{tpu_custom_call.1}
  #allocation0 [shape = 'u32[]', space=smem, size = 0x4, offset = 0x4, fixed_abs, tag = 'smem constant byte address 0x4 - core index']
  #allocation1 [shape = 'u32[144,128]{1,0:T(1,128)}', space=vmem, size = 0x12000, scoped, tag = 'internal scratch']
  #allocation2 [shape = 'f32[128,128]{1,0:T(8,128)}', space=vmem, size = 0x10000, scoped, tag = 'scratch operand']
  %s0 = inlined_call_operand.hbm [shape: f32[128,128], index: 0, kind: input, shape index: {}]
  %s1 = inlined_call_operand.hbm [shape: f32[128,128], index: 1, kind: input, shape index: {}]
  %s2 = inlined_call_operand.vmem [shape: f32[1,128], index: 2, kind: input, shape index: {}]
  %s3 = inlined_call_operand.hbm [shape: f32[128,128], index: 3, kind: input, shape index: {}]
  %s4 = inlined_call_operand.vmem [shape: f32[1,128], index: 4, kind: input, shape index: {}]
  %s5 = inlined_call_operand.hbm [shape: f32[128,128], index: 5, kind: output, shape index: {}]
  %s6 = sld [smem:[#allocation0]]
  $region46: #{tpu_custom_call.1} parent=0
    _
  %s8 = ssub.s32 1, %s6
  %s9 = scalar_select 0, %s8, %s6
  $region1: #{tpu_custom_call.1} parent=0
    #allocation3 [shape = 'u8[65536]{0}', space=vmem, size = 0x10000, scoped, tag = 'input window, operand 0, single buffered']
    #allocation4 [shape = 's32[1]{0}', space=sflag, size = 0x4, scoped, tag = 'scoped memory for tpu_custom_call.1']
    #allocation5 [shape = 's32[1]{0}', space=sflag, size = 0x4, scoped, tag = 'scoped memory for tpu_custom_call.1']
    #allocation6 [shape = 'u8[65536]{0}', space=vmem, size = 0x10000, scoped, tag = 'input window, operand 1, single buffered']
    #allocation7 [shape = 's32[1]{0}', space=sflag, size = 0x4, scoped, tag = 'scoped memory for tpu_custom_call.1']
    #allocation8 [shape = 'u8[65536]{0}', space=vmem, size = 0x10000, scoped, tag = 'input window, operand 3, single buffered']
    #allocation9 [shape = 'u8[65536]{0}', space=vmem, size = 0x10000, scoped, tag = 'output window, operand 0, single buffered']
    %10 = vsyncpa [#allocation4], 0
    %11 = vsyncpa [#allocation7], 0
    %12 = vsyncpa [#allocation5], 0
    // Predicated region
    $region2: #{tpu_custom_call.1} parent=1 // pred_check
      _
    $region3: #{tpu_custom_call.1} parent=1 // pred_check_branch
      %14 = sbr.rel (0) target = $region5
    $region4: #{tpu_custom_call.1} parent=1 // pred_region
      %s16 = ssub.s32 2048, 2048
      %17 = vsyncadd [#allocation4], %s16
      %s18 = sshll.u32 [#allocation3], 4
      %s19 = int_to_ptr.vmem [resolvable:$true] %s18
      %24 = dma.hbm_to_vmem [thread:$0]  %s0, 2048, %s19, [#allocation4], 128, 128, 8
    $region5: #{tpu_custom_call.1} parent=1 // pred_fallthru
      _
    // Predicated region
    $region6: #{tpu_custom_call.1} parent=1 // pred_check
      _
    $region7: #{tpu_custom_call.1} parent=1 // pred_check_branch
      %26 = sbr.rel (0) target = $region9
    $region8: #{tpu_custom_call.1} parent=1 // pred_region
      %s28 = ssub.s32 2048, 2048
      %29 = vsyncadd [#allocation7], %s28
      %s30 = sshll.u32 [#allocation6], 4
      %s31 = int_to_ptr.vmem [resolvable:$true] %s30
      %36 = dma.hbm_to_vmem [thread:$0]  %s1, 2048, %s31, [#allocation7], 128, 128, 8
    $region9: #{tpu_custom_call.1} parent=1 // pred_fallthru
      _
    // Predicated region
    $region10: #{tpu_custom_call.1} parent=1 // pred_check
      _
    $region11: #{tpu_custom_call.1} parent=1 // pred_check_branch
      %38 = sbr.rel (0) target = $region13
    $region12: #{tpu_custom_call.1} parent=1 // pred_region
      _
    $region13: #{tpu_custom_call.1} parent=1 // pred_fallthru
      _
    // Predicated region
    $region14: #{tpu_custom_call.1} parent=1 // pred_check
      _
    $region15: #{tpu_custom_call.1} parent=1 // pred_check_branch
      %40 = sbr.rel (0) target = $region17
    $region16: #{tpu_custom_call.1} parent=1 // pred_region
      %s42 = ssub.s32 2048, 2048
      %43 = vsyncadd [#allocation7], %s42
      %s44 = sshll.u32 [#allocation8], 4
      %s45 = int_to_ptr.vmem [resolvable:$true] %s44
      %50 = dma.hbm_to_vmem [thread:$0]  %s3, 2048, %s45, [#allocation7], 128, 128, 8
    $region17: #{tpu_custom_call.1} parent=1 // pred_fallthru
      _
    // Predicated region
    $region18: #{tpu_custom_call.1} parent=1 // pred_check
      _
    $region19: #{tpu_custom_call.1} parent=1 // pred_check_branch
      %52 = sbr.rel (0) target = $region21
    $region20: #{tpu_custom_call.1} parent=1 // pred_region
      _
    $region21: #{tpu_custom_call.1} parent=1 // pred_fallthru
      _
    // Predicated region
    $region22: #{tpu_custom_call.1} parent=1 // pred_check
      _
    $region23: #{tpu_custom_call.1} parent=1 // pred_check_branch
      %54 = sbr.rel (0) target = $region25
    $region24: #{tpu_custom_call.1} parent=1 // pred_region
      %55 = dma.done [#allocation4], 2048
    $region25: #{tpu_custom_call.1} parent=1 // pred_fallthru
      _
    // Predicated region
    $region26: #{tpu_custom_call.1} parent=1 // pred_check
      _
    $region27: #{tpu_custom_call.1} parent=1 // pred_check_branch
      %57 = sbr.rel (0) target = $region29
    $region28: #{tpu_custom_call.1} parent=1 // pred_region
      %58 = dma.done [#allocation7], 2048
    $region29: #{tpu_custom_call.1} parent=1 // pred_fallthru
      _
    // Predicated region
    $region30: #{tpu_custom_call.1} parent=1 // pred_check
      _
    $region31: #{tpu_custom_call.1} parent=1 // pred_check_branch
      %60 = sbr.rel (0) target = $region33
    $region32: #{tpu_custom_call.1} parent=1 // pred_region
      %61 = dma.done [#allocation7], 2048
    $region33: #{tpu_custom_call.1} parent=1 // pred_fallthru
      _
    %p62 = scmp.eq.s32.totalorder 0, 0
    // Predicated region
    $region34: #{tpu_custom_call.1} parent=1 // pred_check
      %p63 = pneg %p62
    $region35: #{tpu_custom_call.1} parent=1 // pred_check_branch
      %65 = sbr.rel (%p63) target = $region37
    $region36: #{tpu_custom_call.1} parent=1 // pred_region
      %v66 = vld [vmem:[#allocation3] sm:$0xff]
      %v67 = vld [vmem:[#allocation3 + $0x8] sm:$0xff]
      %v68 = vld [vmem:[#allocation3 + $0x10] sm:$0xff]
      %v69 = vld [vmem:[#allocation3 + $0x18] sm:$0xff]
      %v70 = vld [vmem:[#allocation3 + $0x20] sm:$0xff]
      %v71 = vld [vmem:[#allocation3 + $0x28] sm:$0xff]
      %v72 = vld [vmem:[#allocation3 + $0x30] sm:$0xff]
      %v73 = vld [vmem:[#allocation3 + $0x38] sm:$0xff]
      %v74 = vld [vmem:[#allocation3 + $0x40] sm:$0xff]
      %v75 = vld [vmem:[#allocation3 + $0x48] sm:$0xff]
      %v76 = vld [vmem:[#allocation3 + $0x50] sm:$0xff]
      %v77 = vld [vmem:[#allocation3 + $0x58] sm:$0xff]
      %v78 = vld [vmem:[#allocation3 + $0x60] sm:$0xff]
      %v79 = vld [vmem:[#allocation3 + $0x68] sm:$0xff]
      %v80 = vld [vmem:[#allocation3 + $0x70] sm:$0xff]
      %v81 = vld [vmem:[#allocation3 + $0x78] sm:$0xff]
      %v82 = vld [vmem:[#allocation6] sm:$0xff]
      %v83 = vld [vmem:[#allocation6 + $0x8] sm:$0xff]
      %v84 = vld [vmem:[#allocation6 + $0x10] sm:$0xff]
      %v85 = vld [vmem:[#allocation6 + $0x18] sm:$0xff]
      %v86 = vld [vmem:[#allocation6 + $0x20] sm:$0xff]
      %v87 = vld [vmem:[#allocation6 + $0x28] sm:$0xff]
      %v88 = vld [vmem:[#allocation6 + $0x30] sm:$0xff]
      %v89 = vld [vmem:[#allocation6 + $0x38] sm:$0xff]
      %v90 = vld [vmem:[#allocation6 + $0x40] sm:$0xff]
      %v91 = vld [vmem:[#allocation6 + $0x48] sm:$0xff]
      %v92 = vld [vmem:[#allocation6 + $0x50] sm:$0xff]
      %v93 = vld [vmem:[#allocation6 + $0x58] sm:$0xff]
      %v94 = vld [vmem:[#allocation6 + $0x60] sm:$0xff]
      %v95 = vld [vmem:[#allocation6 + $0x68] sm:$0xff]
      %v96 = vld [vmem:[#allocation6 + $0x70] sm:$0xff]
      %v97 = vld [vmem:[#allocation6 + $0x78] sm:$0xff]
      %v98 = vld [vmem:[%s2] sm:$0x1]
      %v100 = vlaneseq
      %v101 = vshrl.u32 %v100, 7
      %v102 = vsub.s32 0, %v101
      %v103 = vrot.slane %v98, %v102
      %105 = vmatprep.subr.mxu0 0.0
      %106 = vmatpush1.msra.mxu0 %v97
      %107 = vmatprep.subr.mxu0 0.0
      %108 = vmatpush1.msra.mxu0 %v96
      %109 = vmatprep.subr.mxu0 0.0
      %110 = vmatpush1.msra.mxu0 %v95
      %111 = vmatprep.subr.mxu0 0.0
      %112 = vmatpush1.msra.mxu0 %v94
      %113 = vmatprep.subr.mxu0 0.0
      %114 = vmatpush1.msra.mxu0 %v93
      %115 = vmatprep.subr.mxu0 0.0
      %116 = vmatpush1.msra.mxu0 %v92
      %117 = vmatprep.subr.mxu0 0.0
      %118 = vmatpush1.msra.mxu0 %v91
      %119 = vmatprep.subr.mxu0 0.0
      %120 = vmatpush1.msra.mxu0 %v90
      %121 = vmatprep.subr.mxu0 0.0
      %122 = vmatpush1.msra.mxu0 %v89
      %123 = vmatprep.subr.mxu0 0.0
      %124 = vmatpush1.msra.mxu0 %v88
      %125 = vmatprep.subr.mxu0 0.0
      %126 = vmatpush1.msra.mxu0 %v87
      %127 = vmatprep.subr.mxu0 0.0
      %128 = vmatpush1.msra.mxu0 %v86
      %129 = vmatprep.subr.mxu0 0.0
      %130 = vmatpush1.msra.mxu0 %v85
      %131 = vmatprep.subr.mxu0 0.0
      %132 = vmatpush1.msra.mxu0 %v84
      %133 = vmatprep.subr.mxu0 0.0
      %134 = vmatpush1.msra.mxu0 %v83
      %135 = vmatprep.subr.mxu0 0.0
      %136 = vmatpush1.msra.mxu0 %v82
      %137 = vmatprep.subr.mxu0 0.0
      %138 = vmatpush2.msra.mxu0 0.0
      %139 = vmatprep.subr.mxu0 0.0
      %140 = vmatpush2.msra.mxu0 0.0
      %141 = vmatprep.subr.mxu0 0.0
      %142 = vmatpush2.msra.mxu0 0.0
      %143 = vmatprep.subr.mxu0 0.0
      %144 = vmatpush2.msra.mxu0 0.0
      %145 = vmatprep.subr.mxu0 0.0
      %146 = vmatpush2.msra.mxu0 0.0
      %147 = vmatprep.subr.mxu0 0.0
      %148 = vmatpush2.msra.mxu0 0.0
      %149 = vmatprep.subr.mxu0 0.0
      %150 = vmatpush2.msra.mxu0 0.0
      %151 = vmatprep.subr.mxu0 0.0
      %152 = vmatpush2.msra.mxu0 0.0
      %153 = vmatprep.subr.mxu0 0.0
      %154 = vmatpush2.msra.mxu0 0.0
      %155 = vmatprep.subr.mxu0 0.0
      %156 = vmatpush2.msra.mxu0 0.0
      %157 = vmatprep.subr.mxu0 0.0
      %158 = vmatpush2.msra.mxu0 0.0
      %159 = vmatprep.subr.mxu0 0.0
      %160 = vmatpush2.msra.mxu0 0.0
      %161 = vmatprep.subr.mxu0 0.0
      %162 = vmatpush2.msra.mxu0 0.0
      %163 = vmatprep.subr.mxu0 0.0
      %164 = vmatpush2.msra.mxu0 0.0
      %165 = vmatprep.subr.mxu0 0.0
      %166 = vmatpush2.msra.mxu0 0.0
      %167 = vmatprep.subr.mxu0 0.0
      %168 = vmatpush2.msra.mxu0 0.0
      %169 = vmatprep.mubr.f32.mxu0 0.0
      %170 = vmatmul.mubr.f32.gmra.mxu0 %v66
      %v171 = vpop.f32.mrf.mxu0
      %v172 = vadd.f32 %v103, %v171
      %v173 = vpop.f32.mrf.mxu0
      %174 = vmatprep.mubr.f32.mxu0 0.0
      %175 = vmatmul.mubr.f32.gmra.mxu0 %v67
      %v176 = vpop.f32.mrf.mxu0
      %v177 = vadd.f32 %v103, %v176
      %v178 = vpop.f32.mrf.mxu0
      %179 = vmatprep.mubr.f32.mxu0 0.0
      %180 = vmatmul.mubr.f32.gmra.mxu0 %v68
      %v181 = vpop.f32.mrf.mxu0
      %v182 = vadd.f32 %v103, %v181
      %v183 = vpop.f32.mrf.mxu0
      %184 = vmatprep.mubr.f32.mxu0 0.0
      %185 = vmatmul.mubr.f32.gmra.mxu0 %v69
      %v186 = vpop.f32.mrf.mxu0
      %v187 = vadd.f32 %v103, %v186
      %v188 = vpop.f32.mrf.mxu0
      %189 = vmatprep.mubr.f32.mxu0 0.0
      %190 = vmatmul.mubr.f32.gmra.mxu0 %v70
      %v191 = vpop.f32.mrf.mxu0
      %v192 = vadd.f32 %v103, %v191
      %v193 = vpop.f32.mrf.mxu0
      %194 = vmatprep.mubr.f32.mxu0 0.0
      %195 = vmatmul.mubr.f32.gmra.mxu0 %v71
      %v196 = vpop.f32.mrf.mxu0
      %v197 = vadd.f32 %v103, %v196
      %v198 = vpop.f32.mrf.mxu0
      %199 = vmatprep.mubr.f32.mxu0 0.0
      %200 = vmatmul.mubr.f32.gmra.mxu0 %v72
      %v201 = vpop.f32.mrf.mxu0
      %v202 = vadd.f32 %v103, %v201
      %v203 = vpop.f32.mrf.mxu0
      %204 = vmatprep.mubr.f32.mxu0 0.0
      %205 = vmatmul.mubr.f32.gmra.mxu0 %v73
      %v206 = vpop.f32.mrf.mxu0
      %v207 = vadd.f32 %v103, %v206
      %v208 = vpop.f32.mrf.mxu0
      %209 = vmatprep.mubr.f32.mxu0 0.0
      %210 = vmatmul.mubr.f32.gmra.mxu0 %v74
      %v211 = vpop.f32.mrf.mxu0
      %v212 = vadd.f32 %v103, %v211
      %v213 = vpop.f32.mrf.mxu0
      %214 = vmatprep.mubr.f32.mxu0 0.0
      %215 = vmatmul.mubr.f32.gmra.mxu0 %v75
      %v216 = vpop.f32.mrf.mxu0
      %v217 = vadd.f32 %v103, %v216
      %v218 = vpop.f32.mrf.mxu0
      %219 = vmatprep.mubr.f32.mxu0 0.0
      %220 = vmatmul.mubr.f32.gmra.mxu0 %v76
      %v221 = vpop.f32.mrf.mxu0
      %v222 = vadd.f32 %v103, %v221
      %v223 = vpop.f32.mrf.mxu0
      %224 = vmatprep.mubr.f32.mxu0 0.0
      %225 = vmatmul.mubr.f32.gmra.mxu0 %v77
      %v226 = vpop.f32.mrf.mxu0
      %v227 = vadd.f32 %v103, %v226
      %v228 = vpop.f32.mrf.mxu0
      %229 = vmatprep.mubr.f32.mxu0 0.0
      %230 = vmatmul.mubr.f32.gmra.mxu0 %v78
      %v231 = vpop.f32.mrf.mxu0
      %v232 = vadd.f32 %v103, %v231
      %v233 = vpop.f32.mrf.mxu0
      %234 = vmatprep.mubr.f32.mxu0 0.0
      %235 = vmatmul.mubr.f32.gmra.mxu0 %v79
      %v236 = vpop.f32.mrf.mxu0
      %v237 = vadd.f32 %v103, %v236
      %v238 = vpop.f32.mrf.mxu0
      %239 = vmatprep.mubr.f32.mxu0 0.0
      %240 = vmatmul.mubr.f32.gmra.mxu0 %v80
      %v241 = vpop.f32.mrf.mxu0
      %v242 = vadd.f32 %v103, %v241
      %v243 = vpop.f32.mrf.mxu0
      %244 = vmatprep.mubr.f32.mxu0 0.0
      %245 = vmatmul.mubr.f32.gmra.mxu0 %v81
      %v246 = vpop.f32.mrf.mxu0
      %v247 = vadd.f32 %v103, %v246
      %v248 = vpop.f32.mrf.mxu0
      %249 = vdwg.mxu0
      %v250 = vmax.f32 %v172, 0.0
      %v251 = vmax.f32 %v177, 0.0
      %v252 = vmax.f32 %v182, 0.0
      %v253 = vmax.f32 %v187, 0.0
      %v254 = vmax.f32 %v192, 0.0
      %v255 = vmax.f32 %v197, 0.0
      %v256 = vmax.f32 %v202, 0.0
      %v257 = vmax.f32 %v207, 0.0
      %v258 = vmax.f32 %v212, 0.0
      %v259 = vmax.f32 %v217, 0.0
      %v260 = vmax.f32 %v222, 0.0
      %v261 = vmax.f32 %v227, 0.0
      %v262 = vmax.f32 %v232, 0.0
      %v263 = vmax.f32 %v237, 0.0
      %v264 = vmax.f32 %v242, 0.0
      %v265 = vmax.f32 %v247, 0.0
      %266 = vst [vmem:[#allocation2] sm:$0xff] %v250
      %267 = vst [vmem:[#allocation2 + $0x8] sm:$0xff] %v251
      %268 = vst [vmem:[#allocation2 + $0x10] sm:$0xff] %v252
      %269 = vst [vmem:[#allocation2 + $0x18] sm:$0xff] %v253
      %270 = vst [vmem:[#allocation2 + $0x20] sm:$0xff] %v254
      %271 = vst [vmem:[#allocation2 + $0x28] sm:$0xff] %v255
      %272 = vst [vmem:[#allocation2 + $0x30] sm:$0xff] %v256
      %273 = vst [vmem:[#allocation2 + $0x38] sm:$0xff] %v257
      %274 = vst [vmem:[#allocation2 + $0x40] sm:$0xff] %v258
      %275 = vst [vmem:[#allocation2 + $0x48] sm:$0xff] %v259
      %276 = vst [vmem:[#allocation2 + $0x50] sm:$0xff] %v260
      %277 = vst [vmem:[#allocation2 + $0x58] sm:$0xff] %v261
      %278 = vst [vmem:[#allocation2 + $0x60] sm:$0xff] %v262
      %279 = vst [vmem:[#allocation2 + $0x68] sm:$0xff] %v263
      %280 = vst [vmem:[#allocation2 + $0x70] sm:$0xff] %v264
      %281 = vst [vmem:[#allocation2 + $0x78] sm:$0xff] %v265
    $region37: #{tpu_custom_call.1} parent=1 // pred_fallthru
      _
    %v282 = vld [vmem:[#allocation2] sm:$0xff]
    %v283 = vld [vmem:[#allocation2 + $0x8] sm:$0xff]
    %v284 = vld [vmem:[#allocation2 + $0x10] sm:$0xff]
    %v285 = vld [vmem:[#allocation2 + $0x18] sm:$0xff]
    %v286 = vld [vmem:[#allocation2 + $0x20] sm:$0xff]
    %v287 = vld [vmem:[#allocation2 + $0x28] sm:$0xff]
    %v288 = vld [vmem:[#allocation2 + $0x30] sm:$0xff]
    %v289 = vld [vmem:[#allocation2 + $0x38] sm:$0xff]
    %v290 = vld [vmem:[#allocation2 + $0x40] sm:$0xff]
    %v291 = vld [vmem:[#allocation2 + $0x48] sm:$0xff]
    %v292 = vld [vmem:[#allocation2 + $0x50] sm:$0xff]
    %v293 = vld [vmem:[#allocation2 + $0x58] sm:$0xff]
    %v294 = vld [vmem:[#allocation2 + $0x60] sm:$0xff]
    %v295 = vld [vmem:[#allocation2 + $0x68] sm:$0xff]
    %v296 = vld [vmem:[#allocation2 + $0x70] sm:$0xff]
    %v297 = vld [vmem:[#allocation2 + $0x78] sm:$0xff]
    %v298 = vld [vmem:[#allocation8] sm:$0xff]
    %v299 = vld [vmem:[#allocation8 + $0x8] sm:$0xff]
    %v300 = vld [vmem:[#allocation8 + $0x10] sm:$0xff]
    %v301 = vld [vmem:[#allocation8 + $0x18] sm:$0xff]
    %v302 = vld [vmem:[#allocation8 + $0x20] sm:$0xff]
    %v303 = vld [vmem:[#allocation8 + $0x28] sm:$0xff]
    %v304 = vld [vmem:[#allocation8 + $0x30] sm:$0xff]
    %v305 = vld [vmem:[#allocation8 + $0x38] sm:$0xff]
    %v306 = vld [vmem:[#allocation8 + $0x40] sm:$0xff]
    %v307 = vld [vmem:[#allocation8 + $0x48] sm:$0xff]
    %v308 = vld [vmem:[#allocation8 + $0x50] sm:$0xff]
    %v309 = vld [vmem:[#allocation8 + $0x58] sm:$0xff]
    %v310 = vld [vmem:[#allocation8 + $0x60] sm:$0xff]
    %v311 = vld [vmem:[#allocation8 + $0x68] sm:$0xff]
    %v312 = vld [vmem:[#allocation8 + $0x70] sm:$0xff]
    %v313 = vld [vmem:[#allocation8 + $0x78] sm:$0xff]
    %v314 = vld [vmem:[%s4] sm:$0x1]
    %v316 = vlaneseq
    %v317 = vshrl.u32 %v316, 7
    %v318 = vsub.s32 0, %v317
    %v319 = vrot.slane %v314, %v318
    %321 = vmatprep.subr.mxu0 0.0
    %322 = vmatpush1.msra.mxu0 %v313
    %323 = vmatprep.subr.mxu0 0.0
    %324 = vmatpush1.msra.mxu0 %v312
    %325 = vmatprep.subr.mxu0 0.0
    %326 = vmatpush1.msra.mxu0 %v311
    %327 = vmatprep.subr.mxu0 0.0
    %328 = vmatpush1.msra.mxu0 %v310
    %329 = vmatprep.subr.mxu0 0.0
    %330 = vmatpush1.msra.mxu0 %v309
    %331 = vmatprep.subr.mxu0 0.0
    %332 = vmatpush1.msra.mxu0 %v308
    %333 = vmatprep.subr.mxu0 0.0
    %334 = vmatpush1.msra.mxu0 %v307
    %335 = vmatprep.subr.mxu0 0.0
    %336 = vmatpush1.msra.mxu0 %v306
    %337 = vmatprep.subr.mxu0 0.0
    %338 = vmatpush1.msra.mxu0 %v305
    %339 = vmatprep.subr.mxu0 0.0
    %340 = vmatpush1.msra.mxu0 %v304
    %341 = vmatprep.subr.mxu0 0.0
    %342 = vmatpush1.msra.mxu0 %v303
    %343 = vmatprep.subr.mxu0 0.0
    %344 = vmatpush1.msra.mxu0 %v302
    %345 = vmatprep.subr.mxu0 0.0
    %346 = vmatpush1.msra.mxu0 %v301
    %347 = vmatprep.subr.mxu0 0.0
    %348 = vmatpush1.msra.mxu0 %v300
    %349 = vmatprep.subr.mxu0 0.0
    %350 = vmatpush1.msra.mxu0 %v299
    %351 = vmatprep.subr.mxu0 0.0
    %352 = vmatpush1.msra.mxu0 %v298
    %353 = vmatprep.subr.mxu0 0.0
    %354 = vmatpush2.msra.mxu0 0.0
    %355 = vmatprep.subr.mxu0 0.0
    %356 = vmatpush2.msra.mxu0 0.0
    %357 = vmatprep.subr.mxu0 0.0
    %358 = vmatpush2.msra.mxu0 0.0
    %359 = vmatprep.subr.mxu0 0.0
    %360 = vmatpush2.msra.mxu0 0.0
    %361 = vmatprep.subr.mxu0 0.0
    %362 = vmatpush2.msra.mxu0 0.0
    %363 = vmatprep.subr.mxu0 0.0
    %364 = vmatpush2.msra.mxu0 0.0
    %365 = vmatprep.subr.mxu0 0.0
    %366 = vmatpush2.msra.mxu0 0.0
    %367 = vmatprep.subr.mxu0 0.0
    %368 = vmatpush2.msra.mxu0 0.0
    %369 = vmatprep.subr.mxu0 0.0
    %370 = vmatpush2.msra.mxu0 0.0
    %371 = vmatprep.subr.mxu0 0.0
    %372 = vmatpush2.msra.mxu0 0.0
    %373 = vmatprep.subr.mxu0 0.0
    %374 = vmatpush2.msra.mxu0 0.0
    %375 = vmatprep.subr.mxu0 0.0
    %376 = vmatpush2.msra.mxu0 0.0
    %377 = vmatprep.subr.mxu0 0.0
    %378 = vmatpush2.msra.mxu0 0.0
    %379 = vmatprep.subr.mxu0 0.0
    %380 = vmatpush2.msra.mxu0 0.0
    %381 = vmatprep.subr.mxu0 0.0
    %382 = vmatpush2.msra.mxu0 0.0
    %383 = vmatprep.subr.mxu0 0.0
    %384 = vmatpush2.msra.mxu0 0.0
    %385 = vmatprep.mubr.f32.mxu0 0.0
    %386 = vmatmul.mubr.f32.gmra.mxu0 %v282
    %v387 = vpop.f32.mrf.mxu0
    %v388 = vadd.f32 %v319, %v387
    %v389 = vpop.f32.mrf.mxu0
    %390 = vmatprep.mubr.f32.mxu0 0.0
    %391 = vmatmul.mubr.f32.gmra.mxu0 %v283
    %v392 = vpop.f32.mrf.mxu0
    %v393 = vadd.f32 %v319, %v392
    %v394 = vpop.f32.mrf.mxu0
    %395 = vmatprep.mubr.f32.mxu0 0.0
    %396 = vmatmul.mubr.f32.gmra.mxu0 %v284
    %v397 = vpop.f32.mrf.mxu0
    %v398 = vadd.f32 %v319, %v397
    %v399 = vpop.f32.mrf.mxu0
    %400 = vmatprep.mubr.f32.mxu0 0.0
    %401 = vmatmul.mubr.f32.gmra.mxu0 %v285
    %v402 = vpop.f32.mrf.mxu0
    %v403 = vadd.f32 %v319, %v402
    %v404 = vpop.f32.mrf.mxu0
    %405 = vmatprep.mubr.f32.mxu0 0.0
    %406 = vmatmul.mubr.f32.gmra.mxu0 %v286
    %v407 = vpop.f32.mrf.mxu0
    %v408 = vadd.f32 %v319, %v407
    %v409 = vpop.f32.mrf.mxu0
    %410 = vmatprep.mubr.f32.mxu0 0.0
    %411 = vmatmul.mubr.f32.gmra.mxu0 %v287
    %v412 = vpop.f32.mrf.mxu0
    %v413 = vadd.f32 %v319, %v412
    %v414 = vpop.f32.mrf.mxu0
    %415 = vmatprep.mubr.f32.mxu0 0.0
    %416 = vmatmul.mubr.f32.gmra.mxu0 %v288
    %v417 = vpop.f32.mrf.mxu0
    %v418 = vadd.f32 %v319, %v417
    %v419 = vpop.f32.mrf.mxu0
    %420 = vmatprep.mubr.f32.mxu0 0.0
    %421 = vmatmul.mubr.f32.gmra.mxu0 %v289
    %v422 = vpop.f32.mrf.mxu0
    %v423 = vadd.f32 %v319, %v422
    %v424 = vpop.f32.mrf.mxu0
    %425 = vmatprep.mubr.f32.mxu0 0.0
    %426 = vmatmul.mubr.f32.gmra.mxu0 %v290
    %v427 = vpop.f32.mrf.mxu0
    %v428 = vadd.f32 %v319, %v427
    %v429 = vpop.f32.mrf.mxu0
    %430 = vmatprep.mubr.f32.mxu0 0.0
    %431 = vmatmul.mubr.f32.gmra.mxu0 %v291
    %v432 = vpop.f32.mrf.mxu0
    %v433 = vadd.f32 %v319, %v432
    %v434 = vpop.f32.mrf.mxu0
    %435 = vmatprep.mubr.f32.mxu0 0.0
    %436 = vmatmul.mubr.f32.gmra.mxu0 %v292
    %v437 = vpop.f32.mrf.mxu0
    %v438 = vadd.f32 %v319, %v437
    %v439 = vpop.f32.mrf.mxu0
    %440 = vmatprep.mubr.f32.mxu0 0.0
    %441 = vmatmul.mubr.f32.gmra.mxu0 %v293
    %v442 = vpop.f32.mrf.mxu0
    %v443 = vadd.f32 %v319, %v442
    %v444 = vpop.f32.mrf.mxu0
    %445 = vmatprep.mubr.f32.mxu0 0.0
    %446 = vmatmul.mubr.f32.gmra.mxu0 %v294
    %v447 = vpop.f32.mrf.mxu0
    %v448 = vadd.f32 %v319, %v447
    %v449 = vpop.f32.mrf.mxu0
    %450 = vmatprep.mubr.f32.mxu0 0.0
    %451 = vmatmul.mubr.f32.gmra.mxu0 %v295
    %v452 = vpop.f32.mrf.mxu0
    %v453 = vadd.f32 %v319, %v452
    %v454 = vpop.f32.mrf.mxu0
    %455 = vmatprep.mubr.f32.mxu0 0.0
    %456 = vmatmul.mubr.f32.gmra.mxu0 %v296
    %v457 = vpop.f32.mrf.mxu0
    %v458 = vadd.f32 %v319, %v457
    %v459 = vpop.f32.mrf.mxu0
    %460 = vmatprep.mubr.f32.mxu0 0.0
    %461 = vmatmul.mubr.f32.gmra.mxu0 %v297
    %v462 = vpop.f32.mrf.mxu0
    %v463 = vadd.f32 %v319, %v462
    %v464 = vpop.f32.mrf.mxu0
    %465 = vdwg.mxu0
    %466 = vst [vmem:[#allocation9] sm:$0xff] %v388
    %467 = vst [vmem:[#allocation9 + $0x8] sm:$0xff] %v393
    %468 = vst [vmem:[#allocation9 + $0x10] sm:$0xff] %v398
    %469 = vst [vmem:[#allocation9 + $0x18] sm:$0xff] %v403
    %470 = vst [vmem:[#allocation9 + $0x20] sm:$0xff] %v408
    %471 = vst [vmem:[#allocation9 + $0x28] sm:$0xff] %v413
    %472 = vst [vmem:[#allocation9 + $0x30] sm:$0xff] %v418
    %473 = vst [vmem:[#allocation9 + $0x38] sm:$0xff] %v423
    %474 = vst [vmem:[#allocation9 + $0x40] sm:$0xff] %v428
    %475 = vst [vmem:[#allocation9 + $0x48] sm:$0xff] %v433
    %476 = vst [vmem:[#allocation9 + $0x50] sm:$0xff] %v438
    %477 = vst [vmem:[#allocation9 + $0x58] sm:$0xff] %v443
    %478 = vst [vmem:[#allocation9 + $0x60] sm:$0xff] %v448
    %479 = vst [vmem:[#allocation9 + $0x68] sm:$0xff] %v453
    %480 = vst [vmem:[#allocation9 + $0x70] sm:$0xff] %v458
    %481 = vst [vmem:[#allocation9 + $0x78] sm:$0xff] %v463
    // Predicated region
    $region38: #{tpu_custom_call.1} parent=1 // pred_check
      _
    $region39: #{tpu_custom_call.1} parent=1 // pred_check_branch
      %483 = sbr.rel (0) target = $region41
    $region40: #{tpu_custom_call.1} parent=1 // pred_region
      %s485 = ssub.s32 2048, 2048
      %486 = vsyncadd [#allocation5], %s485
      %s487 = sshll.u32 [#allocation9], 4
      %s488 = int_to_ptr.vmem [resolvable:$true] %s487
      %493 = dma.vmem_to_hbm [thread:$0]  %s488, 2048, %s5, [#allocation5], 128, 128, 8
    $region41: #{tpu_custom_call.1} parent=1 // pred_fallthru
      _
    // Predicated region
    $region42: #{tpu_custom_call.1} parent=1 // pred_check
      _
    $region43: #{tpu_custom_call.1} parent=1 // pred_check_branch
      %495 = sbr.rel (0) target = $region45
    $region44: #{tpu_custom_call.1} parent=1 // pred_region
      %496 = dma.done [#allocation5], 2048
    $region45: #{tpu_custom_call.1} parent=1 // pred_fallthru
      _
    %497 = vsyncpa [#allocation4], 1
    %498 = vsyncpa [#allocation7], 1
    %499 = vsyncpa [#allocation5], 1

</llo_original>
